<compile_context>
chip_gen: v7x
topology: tpu7x:2x2x1
jax: 0.10.0
libtpu: 0.0.40
codegen_flags: <defaults>
</compile_context>

<pallas_src>
import functools

import jax
import jax.numpy as jnp
from jax.experimental import pallas as pl
from jax.experimental.pallas import tpu as pltpu


def _head_kernel(*refs, num_features):
    # refs = (x_0 .. x_{F-1}, w1, w2, b2, o)
    #   x_f:  (channels, TS)      spatial tile of feature f (lane axis = spatial)
    #   w1:   (F, C, channels)    fuse conv weight, split per concatenated feature
    #   w2:   (n_cls, C)          predict conv weight with BN scale folded in
    #   b2:   (n_cls, 1)          predict conv bias with BN shift folded in (f32)
    #   o:    (n_cls, TS)
    x_refs = refs[:num_features]
    w1_ref, w2_ref, b2_ref, o_ref = refs[num_features:]

    # fuse 1x1 conv == sum over features of W1_f @ x_f   -> (C, TS), f32 acc
    acc = jnp.dot(w1_ref[0], x_refs[0][...], preferred_element_type=jnp.float32)
    for f in range(1, num_features):
        acc = acc + jnp.dot(w1_ref[f], x_refs[f][...],
                            preferred_element_type=jnp.float32)

    h = jnp.maximum(acc, 0.0)                                   # ReLU (f32)

    # predict 1x1 conv (BN already folded into w2/b2)   -> (n_cls, TS)
    out = jnp.dot(w2_ref[...], h.astype(w2_ref.dtype),
                  preferred_element_type=jnp.float32) + b2_ref[...]
    o_ref[...] = out.astype(o_ref.dtype)


@functools.partial(jax.jit, static_argnames=("ts", "compute_dtype"))
def segformer_head(features, w1, gamma, beta, run_mean, run_var, w2, b2,
                   eps=1e-5, ts=1024, compute_dtype=jnp.float32):
    """features: list of NCHW arrays, each (N, channels, H, W).

    Returns (N, num_classes, H, W) in float32 (NCHW, matching the PyTorch module).
    """
    nf = len(features)
    n, ch, hh, ww = features[0].shape
    c = w1.shape[0]                     # fuse out channels
    c_in = w1.shape[1]                  # = nf * ch
    n_cls = w2.shape[0]
    hw = hh * ww

    # NCHW is channel-major: flattening (H, W) -> H*W is a free reshape (no copy).
    feats = [f.reshape(n, ch, hw).astype(compute_dtype) for f in features]

    # Fold BatchNorm (inference) into the predict conv:
    #   BN(y) = scale * y + shift,  scale = gamma/sqrt(var+eps), shift = beta - mean*scale
    #   W2 @ (scale*h + shift) + b2 = (W2*scale) @ h + (W2 @ shift + b2)
    scale = gamma / jnp.sqrt(run_var + eps)                     # (C,)
    shift = beta - run_mean * scale                             # (C,)

    w1_m = w1.reshape(c, c_in)                                  # (C, C_in)
    w1_split = (w1_m.reshape(c, nf, ch)                         # split per feature
                .transpose(1, 0, 2).astype(compute_dtype))      # (F, C, ch)
    w2_m = w2.reshape(n_cls, c)                                 # (n_cls, C)
    w2_fold = (w2_m * scale[None, :]).astype(compute_dtype)     # (n_cls, C)
    b2_fold = (w2_m @ shift + b2).reshape(n_cls, 1).astype(jnp.float32)

    # Spatial tile: big (mem-bound kernel), lane-aligned, no bigger than needed.
    ts_eff = max(128, min(ts, ((hw + 127) // 128) * 128))
    grid = (n, pl.cdiv(hw, ts_eff))                             # ragged last block OK

    # VMEM budget: double-buffered blocks + resident weights + f32 intermediates.
    elt = jnp.dtype(compute_dtype).itemsize
    need = (2 * nf * ch * ts_eff * elt                          # input tiles (x2 buf)
            + 2 * n_cls * ts_eff * 4                            # output tiles (x2 buf)
            + 2 * (nf * c * ch + n_cls * c) * elt + 2 * n_cls * 4   # weights (x2 buf)
            + (c + n_cls) * ts_eff * 4)                         # in-kernel f32 temps
    vmem_limit = int(min(max(2 * need, 8 << 20), 48 << 20))

    x_spec = pl.BlockSpec((None, ch, ts_eff), lambda b, s: (b, 0, s))
    in_specs = ([x_spec] * nf
                + [pl.BlockSpec((nf, c, ch), lambda b, s: (0, 0, 0)),
                   pl.BlockSpec((n_cls, c), lambda b, s: (0, 0)),
                   pl.BlockSpec((n_cls, 1), lambda b, s: (0, 0))])

    out = pl.pallas_call(
        functools.partial(_head_kernel, num_features=nf),
        out_shape=jax.ShapeDtypeStruct((n, n_cls, hw), jnp.float32),
        grid_spec=pltpu.PrefetchScalarGridSpec(
            num_scalar_prefetch=0,
            grid=grid,
            in_specs=in_specs,
            out_specs=pl.BlockSpec((None, n_cls, ts_eff), lambda b, s: (b, 0, s)),
        ),
        compiler_params=pltpu.CompilerParams(
            dimension_semantics=("parallel", "parallel"),
            vmem_limit_bytes=vmem_limit),
    )(*feats, w1_split, w2_fold, b2_fold)

    return out.reshape(n, n_cls, hh, ww)                        # already NCHW


def _reference(features, w1, gamma, beta, run_mean, run_var, w2, b2, eps=1e-5):
    """Pure-JAX reference of the PyTorch forward (BN in eval mode)."""
    x = jnp.concatenate(features, axis=1)                       # (N, C_in, H, W)
    c, c_in = w1.shape[0], w1.shape[1]
    n_cls = w2.shape[0]
    h = jnp.einsum("nihw,oi->nohw", x, w1.reshape(c, c_in))
    h = jnp.maximum(h, 0.0)
    scale = (gamma / jnp.sqrt(run_var + eps))[None, :, None, None]
    shift = (beta - run_mean * gamma / jnp.sqrt(run_var + eps))[None, :, None, None]
    h = h * scale + shift
    y = jnp.einsum("nchw,oc->nohw", h, w2.reshape(n_cls, c)) + b2[None, :, None, None]
    return y


if __name__ == "__main__":
    # Small shapes consistent with the module:
    batch, channels, num_features, num_classes, spatial = 2, 4, 4, 3, 16
    c_in = channels * num_features

    key = jax.random.PRNGKey(0)
    keys = jax.random.split(key, 8)

    # num_features feature maps, each (N, channels, H, W)  (NCHW, as in PyTorch)
    features = [
        jax.random.normal(keys[i], (batch, channels, spatial, spatial), jnp.float32)
        for i in range(num_features)
    ]

    # Deterministic parameter init (shapes from the module's __init__)
    w1 = jax.random.normal(keys[4], (channels, c_in, 1, 1), jnp.float32) * 0.1
    gamma = jnp.abs(jax.random.normal(keys[5], (channels,), jnp.float32)) + 0.5
    beta = jax.random.normal(keys[6], (channels,), jnp.float32) * 0.1
    run_mean = jnp.zeros((channels,), jnp.float32)
    run_var = jnp.ones((channels,), jnp.float32)
    w2 = jax.random.normal(keys[7], (num_classes, channels, 1, 1), jnp.float32) * 0.1
    b2 = jnp.linspace(-0.1, 0.1, num_classes).astype(jnp.float32)

    out = segformer_head(features, w1, gamma, beta, run_mean, run_var, w2, b2)
    out = jax.block_until_ready(out)

    ref = _reference(features, w1, gamma, beta, run_mean, run_var, w2, b2)
    assert out.shape == (batch, num_classes, spatial, spatial), out.shape
    assert jnp.allclose(out, ref, atol=1e-4, rtol=1e-4), "mismatch vs reference"

    print("KERNEL_OK")
</pallas_src>

<mosaic_0001>
module attributes {stable_mosaic.version = 11 : i64} {
  func.func @_head_kernel(%arg0: i32, %arg1: i32, %arg2: memref<1x4x256xf32, #tpu.memory_space<vmem>>, %arg3: memref<1x4x256xf32, #tpu.memory_space<vmem>>, %arg4: memref<1x4x256xf32, #tpu.memory_space<vmem>>, %arg5: memref<1x4x256xf32, #tpu.memory_space<vmem>>, %arg6: memref<4x4x4xf32, #tpu.memory_space<vmem>>, %arg7: memref<3x4xf32, #tpu.memory_space<vmem>>, %arg8: memref<3x1xf32, #tpu.memory_space<vmem>>, %arg9: memref<1x3x256xf32, #tpu.memory_space<vmem>>) attributes {dimension_semantics = [#tpu.dimension_semantics<parallel>, #tpu.dimension_semantics<parallel>], iteration_bounds = array<i64: 2, 1>, scalar_prefetch = 0 : i64, scratch_operands = 0 : i64, tpu.core_type = #tpu.core_type<tc>, window_params = [{transform_indices = @transform_0, window_bounds = array<i64: 1, 4, 256>}, {transform_indices = @transform_1, window_bounds = array<i64: 1, 4, 256>}, {transform_indices = @transform_2, window_bounds = array<i64: 1, 4, 256>}, {transform_indices = @transform_3, window_bounds = array<i64: 1, 4, 256>}, {pipeline_mode = #tpu.pipeline_mode<synchronous>, transform_indices = @transform_4, window_bounds = array<i64: 4, 4, 4>}, {pipeline_mode = #tpu.pipeline_mode<synchronous>, transform_indices = @transform_5, window_bounds = array<i64: 3, 4>}, {pipeline_mode = #tpu.pipeline_mode<synchronous>, transform_indices = @transform_6, window_bounds = array<i64: 3, 1>}, {transform_indices = @transform_7, window_bounds = array<i64: 1, 3, 256>}]} {
    %c0 = arith.constant 0 : index
    %c0_0 = arith.constant 0 : index
    %c0_1 = arith.constant 0 : index
    %0 = vector.load %arg6[%c0, %c0_0, %c0_1] : memref<4x4x4xf32, #tpu.memory_space<vmem>>, vector<1x4x4xf32>
    %1 = vector.shape_cast %0 : vector<1x4x4xf32> to vector<4x4xf32>
    %c0_2 = arith.constant 0 : index
    %c0_3 = arith.constant 0 : index
    %c0_4 = arith.constant 0 : index
    %2 = vector.load %arg2[%c0_2, %c0_3, %c0_4] : memref<1x4x256xf32, #tpu.memory_space<vmem>>, vector<1x4x256xf32>
    %3 = vector.shape_cast %2 : vector<1x4x256xf32> to vector<4x256xf32>
    %cst = arith.constant dense<0.000000e+00> : vector<4x256xf32>
    %4 = tpu.matmul %1, %3, %cst {dimension_numbers = #tpu.dot_dimension_numbers<[1], [0], [0], [1], [0, 0, 1, 1], [], []>} : vector<4x4xf32>, vector<4x256xf32>, vector<4x256xf32> -> vector<4x256xf32>
    %c1 = arith.constant 1 : index
    %c0_5 = arith.constant 0 : index
    %c0_6 = arith.constant 0 : index
    %5 = vector.load %arg6[%c1, %c0_5, %c0_6] : memref<4x4x4xf32, #tpu.memory_space<vmem>>, vector<1x4x4xf32>
    %6 = vector.shape_cast %5 : vector<1x4x4xf32> to vector<4x4xf32>
    %c0_7 = arith.constant 0 : index
    %c0_8 = arith.constant 0 : index
    %c0_9 = arith.constant 0 : index
    %7 = vector.load %arg3[%c0_7, %c0_8, %c0_9] : memref<1x4x256xf32, #tpu.memory_space<vmem>>, vector<1x4x256xf32>
    %8 = vector.shape_cast %7 : vector<1x4x256xf32> to vector<4x256xf32>
    %cst_10 = arith.constant dense<0.000000e+00> : vector<4x256xf32>
    %9 = tpu.matmul %6, %8, %cst_10 {dimension_numbers = #tpu.dot_dimension_numbers<[1], [0], [0], [1], [0, 0, 1, 1], [], []>} : vector<4x4xf32>, vector<4x256xf32>, vector<4x256xf32> -> vector<4x256xf32>
    %10 = arith.addf %4, %9 : vector<4x256xf32>
    %c2 = arith.constant 2 : index
    %c0_11 = arith.constant 0 : index
    %c0_12 = arith.constant 0 : index
    %11 = vector.load %arg6[%c2, %c0_11, %c0_12] : memref<4x4x4xf32, #tpu.memory_space<vmem>>, vector<1x4x4xf32>
    %12 = vector.shape_cast %11 : vector<1x4x4xf32> to vector<4x4xf32>
    %c0_13 = arith.constant 0 : index
    %c0_14 = arith.constant 0 : index
    %c0_15 = arith.constant 0 : index
    %13 = vector.load %arg4[%c0_13, %c0_14, %c0_15] : memref<1x4x256xf32, #tpu.memory_space<vmem>>, vector<1x4x256xf32>
    %14 = vector.shape_cast %13 : vector<1x4x256xf32> to vector<4x256xf32>
    %cst_16 = arith.constant dense<0.000000e+00> : vector<4x256xf32>
    %15 = tpu.matmul %12, %14, %cst_16 {dimension_numbers = #tpu.dot_dimension_numbers<[1], [0], [0], [1], [0, 0, 1, 1], [], []>} : vector<4x4xf32>, vector<4x256xf32>, vector<4x256xf32> -> vector<4x256xf32>
    %16 = arith.addf %10, %15 : vector<4x256xf32>
    %c3 = arith.constant 3 : index
    %c0_17 = arith.constant 0 : index
    %c0_18 = arith.constant 0 : index
    %17 = vector.load %arg6[%c3, %c0_17, %c0_18] : memref<4x4x4xf32, #tpu.memory_space<vmem>>, vector<1x4x4xf32>
    %18 = vector.shape_cast %17 : vector<1x4x4xf32> to vector<4x4xf32>
    %c0_19 = arith.constant 0 : index
    %c0_20 = arith.constant 0 : index
    %c0_21 = arith.constant 0 : index
    %19 = vector.load %arg5[%c0_19, %c0_20, %c0_21] : memref<1x4x256xf32, #tpu.memory_space<vmem>>, vector<1x4x256xf32>
    %20 = vector.shape_cast %19 : vector<1x4x256xf32> to vector<4x256xf32>
    %cst_22 = arith.constant dense<0.000000e+00> : vector<4x256xf32>
    %21 = tpu.matmul %18, %20, %cst_22 {dimension_numbers = #tpu.dot_dimension_numbers<[1], [0], [0], [1], [0, 0, 1, 1], [], []>} : vector<4x4xf32>, vector<4x256xf32>, vector<4x256xf32> -> vector<4x256xf32>
    %22 = arith.addf %16, %21 : vector<4x256xf32>
    %cst_23 = arith.constant 0.000000e+00 : f32
    %23 = vector.broadcast %cst_23 : f32 to vector<4x256xf32>
    %24 = arith.maximumf %22, %23 : vector<4x256xf32>
    %c0_24 = arith.constant 0 : index
    %c0_25 = arith.constant 0 : index
    %25 = vector.load %arg7[%c0_24, %c0_25] : memref<3x4xf32, #tpu.memory_space<vmem>>, vector<3x4xf32>
    %cst_26 = arith.constant dense<0.000000e+00> : vector<3x256xf32>
    %26 = tpu.matmul %25, %24, %cst_26 {dimension_numbers = #tpu.dot_dimension_numbers<[1], [0], [0], [1], [0, 0, 1, 1], [], []>} : vector<3x4xf32>, vector<4x256xf32>, vector<3x256xf32> -> vector<3x256xf32>
    %c0_27 = arith.constant 0 : index
    %c0_28 = arith.constant 0 : index
    %27 = vector.load %arg8[%c0_27, %c0_28] : memref<3x1xf32, #tpu.memory_space<vmem>>, vector<3x1xf32>
    %28 = vector.broadcast %27 : vector<3x1xf32> to vector<3x256xf32>
    %29 = arith.addf %26, %28 : vector<3x256xf32>
    %c0_29 = arith.constant 0 : index
    %c0_30 = arith.constant 0 : index
    %c0_31 = arith.constant 0 : index
    %30 = vector.load %arg9[%c0_29, %c0_30, %c0_31] : memref<1x3x256xf32, #tpu.memory_space<vmem>>, vector<1x3x256xf32>
    %31 = vector.shape_cast %30 : vector<1x3x256xf32> to vector<3x256xf32>
    %32 = vector.shape_cast %29 : vector<3x256xf32> to vector<1x3x256xf32>
    tpu.vector_store %arg9[%c0_29, %c0_30, %c0_31], %32 {strides = array<i32>} : memref<1x3x256xf32, #tpu.memory_space<vmem>>, vector<1x3x256xf32>,
    return
  }
  func.func @transform_0(%arg0: i32, %arg1: i32) -> (i32, i32, i32) {
    %c0_i32 = arith.constant 0 : i32
    %c0_i32_0 = arith.constant 0 : i32
    return %arg0, %c0_i32, %arg1 : i32, i32, i32
  }
  func.func @transform_1(%arg0: i32, %arg1: i32) -> (i32, i32, i32) {
    %c0_i32 = arith.constant 0 : i32
    %c0_i32_0 = arith.constant 0 : i32
    return %arg0, %c0_i32, %arg1 : i32, i32, i32
  }
  func.func @transform_2(%arg0: i32, %arg1: i32) -> (i32, i32, i32) {
    %c0_i32 = arith.constant 0 : i32
    %c0_i32_0 = arith.constant 0 : i32
    return %arg0, %c0_i32, %arg1 : i32, i32, i32
  }
  func.func @transform_3(%arg0: i32, %arg1: i32) -> (i32, i32, i32) {
    %c0_i32 = arith.constant 0 : i32
    %c0_i32_0 = arith.constant 0 : i32
    return %arg0, %c0_i32, %arg1 : i32, i32, i32
  }
  func.func @transform_4(%arg0: i32, %arg1: i32) -> (i32, i32, i32) {
    %c0_i32 = arith.constant 0 : i32
    %c0_i32_0 = arith.constant 0 : i32
    %c0_i32_1 = arith.constant 0 : i32
    %c0_i32_2 = arith.constant 0 : i32
    return %c0_i32, %c0_i32_0, %c0_i32_1 : i32, i32, i32
  }
  func.func @transform_5(%arg0: i32, %arg1: i32) -> (i32, i32) {
    %c0_i32 = arith.constant 0 : i32
    %c0_i32_0 = arith.constant 0 : i32
    %c0_i32_1 = arith.constant 0 : i32
    return %c0_i32, %c0_i32_0 : i32, i32
  }
  func.func @transform_6(%arg0: i32, %arg1: i32) -> (i32, i32) {
    %c0_i32 = arith.constant 0 : i32
    %c0_i32_0 = arith.constant 0 : i32
    %c0_i32_1 = arith.constant 0 : i32
    return %c0_i32, %c0_i32_0 : i32, i32
  }
  func.func @transform_7(%arg0: i32, %arg1: i32) -> (i32, i32, i32) {
    %c0_i32 = arith.constant 0 : i32
    %c0_i32_0 = arith.constant 0 : i32
    return %arg0, %c0_i32, %arg1 : i32, i32, i32
  }
}

</mosaic_0001>

<llo_original>
// kernel: segformer_head.1
$region0: #{segformer_head.1}
  #allocation0 [shape = 'u32[]', space=smem, size = 0x4, offset = 0x4, fixed_abs, tag = 'smem constant byte address 0x4 - core index']
  #allocation1 [shape = 'u32[144,128]{1,0:T(1,128)}', space=vmem, size = 0x12000, scoped, tag = 'internal scratch']
  %s0 = inlined_call_operand.vmem [shape: f32[2,4,256], index: 0, kind: input, shape index: {}]
  %s1 = inlined_call_operand.vmem [shape: f32[2,4,256], index: 1, kind: input, shape index: {}]
  %s2 = inlined_call_operand.vmem [shape: f32[2,4,256], index: 2, kind: input, shape index: {}]
  %s3 = inlined_call_operand.vmem [shape: f32[2,4,256], index: 3, kind: input, shape index: {}]
  %s4 = inlined_call_operand.vmem [shape: f32[4,4,4], index: 4, kind: input, shape index: {}]
  %s5 = inlined_call_operand.vmem [shape: f32[3,4], index: 5, kind: input, shape index: {}]
  %s6 = inlined_call_operand.vmem [shape: f32[3,1], index: 6, kind: input, shape index: {}]
  %s7 = inlined_call_operand.vmem [shape: f32[2,3,256], index: 7, kind: output, shape index: {}]
  %s8 = sld [smem:[#allocation0]]
  $region61: #{segformer_head.1} parent=0
    _
  %s10 = ssub.s32 1, %s8
  %s11 = scalar_select 0, %s10, %s8
  loop: start=0, step=1, limit=4
  $region2: #{segformer_head.1} parent=0 // loop_pre_header
    _
  $region3: #{segformer_head.1} parent=0 // loop_header
    %s13 = sphi 0, %s17
    %p14 = scmp.ge.s32.totalorder %s13, 4
    %s20 = sphi 0, %s32
    %s21 = sphi 0, %s28
    %s22 = sphi 0, %s20
    %s23 = sphi 0, %s21
    %s24 = sphi 0, %s22
    %s25 = sphi 0, %s23
    %s37 = sphi 0, %s39
    %s40 = sphi 0, %s37
    %s41 = sphi 0, %s40
    %s57 = sphi 0, %s41
    %s65 = sphi 0, %s67
    %s68 = sphi 0, %s65
    %s69 = sphi 0, %s68
    %s85 = sphi 0, %s69
    %s93 = sphi 0, %s95
    %s96 = sphi 0, %s93
    %s97 = sphi 0, %s96
    %s113 = sphi 0, %s97
    %s121 = sphi 0, %s123
    %s124 = sphi 0, %s121
    %s125 = sphi 0, %s124
    %s141 = sphi 0, %s125
    %s145 = sphi 0, %s145
    %s147 = sphi 0, %s145
    %s148 = sphi 0, %s147
    %s162 = sphi 0, %s148
    %s166 = sphi 0, %s166
    %s168 = sphi 0, %s166
    %s169 = sphi 0, %s168
    %s183 = sphi 0, %s169
    %s187 = sphi 0, %s187
    %s189 = sphi 0, %s187
    %s190 = sphi 0, %s189
    %s204 = sphi 0, %s190
    %s212 = sphi 0, %s214
    %s215 = sphi 0, %s212
    %s216 = sphi 0, %s215
    %s232 = sphi 0, %s216
  $region4: #{segformer_head.1} parent=0 // loop_header_branch
    %16 = sbr.rel (%p14) target = $region8
  $region5: #{segformer_head.1} parent=0 // loop_body
    %s18 = ssub.s32 %s13, 1
    %s19 = ssub.s32 %s13, 2
    %s26 = sadd.s32 1, %s21
    %p27 = scmp.ge.s32.totalorder %s26, 1
    %s28 = scalar_select %p27, 0, %s26
    %s29 = sadd.s32 1, %s20
    %s30 = scalar_select %p27, %s29, %s20
    %p31 = scmp.ge.s32.totalorder %s30, 2
    %s32 = scalar_select %p31, 0, %s30
    %s33 = ssub.s32 %s20, %s32
    %s34 = ssub.s32 %s21, %s28
    %s35 = sor.u32 %s33, %s34
    %p36 = scmp.eq.s32.totalorder %s35, 0
    %s38 = sadd.s32 %s37, 1
    %s39 = scalar_select %p36, %s37, %s38
    %p42 = pneg %p36
    %p43 = scmp.eq.s32.totalorder %s13, 1
    %p44 = por %p42, %p43
    %p45 = scmp.ne.s32.totalorder %s37, %s40
    %p46 = scmp.eq.s32.totalorder %s13, 0
    %p47 = por %p45, %p46
    %p48 = scmp.ne.s32.totalorder %s37, %s40
    %p49 = scmp.eq.s32.totalorder %s18, 1
    %p50 = por %p48, %p49
    %p51 = scmp.ne.s32.totalorder %s40, %s41
    %p52 = scmp.eq.s32.totalorder %s18, 0
    %p53 = por %p51, %p52
    %p54 = scmp.ne.s32.totalorder %s40, %s41
    %p55 = scmp.eq.s32.totalorder %s19, 1
    %p56 = por %p54, %p55
    %p58 = scmp.ne.s32.totalorder %s41, %s57
    %p59 = scmp.eq.s32.totalorder %s19, 0
    %p60 = por %p58, %p59
    %s61 = ssub.s32 %s20, %s32
    %s62 = ssub.s32 %s21, %s28
    %s63 = sor.u32 %s61, %s62
    %p64 = scmp.eq.s32.totalorder %s63, 0
    %s66 = sadd.s32 %s65, 1
    %s67 = scalar_select %p64, %s65, %s66
    %p70 = pneg %p64
    %p71 = scmp.eq.s32.totalorder %s13, 1
    %p72 = por %p70, %p71
    %p73 = scmp.ne.s32.totalorder %s65, %s68
    %p74 = scmp.eq.s32.totalorder %s13, 0
    %p75 = por %p73, %p74
    %p76 = scmp.ne.s32.totalorder %s65, %s68
    %p77 = scmp.eq.s32.totalorder %s18, 1
    %p78 = por %p76, %p77
    %p79 = scmp.ne.s32.totalorder %s68, %s69
    %p80 = scmp.eq.s32.totalorder %s18, 0
    %p81 = por %p79, %p80
    %p82 = scmp.ne.s32.totalorder %s68, %s69
    %p83 = scmp.eq.s32.totalorder %s19, 1
    %p84 = por %p82, %p83
    %p86 = scmp.ne.s32.totalorder %s69, %s85
    %p87 = scmp.eq.s32.totalorder %s19, 0
    %p88 = por %p86, %p87
    %s89 = ssub.s32 %s20, %s32
    %s90 = ssub.s32 %s21, %s28
    %s91 = sor.u32 %s89, %s90
    %p92 = scmp.eq.s32.totalorder %s91, 0
    %s94 = sadd.s32 %s93, 1
    %s95 = scalar_select %p92, %s93, %s94
    %p98 = pneg %p92
    %p99 = scmp.eq.s32.totalorder %s13, 1
    %p100 = por %p98, %p99
    %p101 = scmp.ne.s32.totalorder %s93, %s96
    %p102 = scmp.eq.s32.totalorder %s13, 0
    %p103 = por %p101, %p102
    %p104 = scmp.ne.s32.totalorder %s93, %s96
    %p105 = scmp.eq.s32.totalorder %s18, 1
    %p106 = por %p104, %p105
    %p107 = scmp.ne.s32.totalorder %s96, %s97
    %p108 = scmp.eq.s32.totalorder %s18, 0
    %p109 = por %p107, %p108
    %p110 = scmp.ne.s32.totalorder %s96, %s97
    %p111 = scmp.eq.s32.totalorder %s19, 1
    %p112 = por %p110, %p111
    %p114 = scmp.ne.s32.totalorder %s97, %s113
    %p115 = scmp.eq.s32.totalorder %s19, 0
    %p116 = por %p114, %p115
    %s117 = ssub.s32 %s20, %s32
    %s118 = ssub.s32 %s21, %s28
    %s119 = sor.u32 %s117, %s118
    %p120 = scmp.eq.s32.totalorder %s119, 0
    %s122 = sadd.s32 %s121, 1
    %s123 = scalar_select %p120, %s121, %s122
    %p126 = pneg %p120
    %p127 = scmp.eq.s32.totalorder %s13, 1
    %p128 = por %p126, %p127
    %p129 = scmp.ne.s32.totalorder %s121, %s124
    %p130 = scmp.eq.s32.totalorder %s13, 0
    %p131 = por %p129, %p130
    %p132 = scmp.ne.s32.totalorder %s121, %s124
    %p133 = scmp.eq.s32.totalorder %s18, 1
    %p134 = por %p132, %p133
    %p135 = scmp.ne.s32.totalorder %s124, %s125
    %p136 = scmp.eq.s32.totalorder %s18, 0
    %p137 = por %p135, %p136
    %p138 = scmp.ne.s32.totalorder %s124, %s125
    %p139 = scmp.eq.s32.totalorder %s19, 1
    %p140 = por %p138, %p139
    %p142 = scmp.ne.s32.totalorder %s125, %s141
    %p143 = scmp.eq.s32.totalorder %s19, 0
    %p144 = por %p142, %p143
    %s146 = sadd.s32 %s145, 1
    %p149 = scmp.eq.s32.totalorder %s13, 1
    %p150 = scmp.ne.s32.totalorder %s145, %s147
    %p151 = scmp.eq.s32.totalorder %s13, 0
    %p152 = por %p150, %p151
    %p153 = scmp.ne.s32.totalorder %s145, %s147
    %p154 = scmp.eq.s32.totalorder %s18, 1
    %p155 = por %p153, %p154
    %p156 = scmp.ne.s32.totalorder %s147, %s148
    %p157 = scmp.eq.s32.totalorder %s18, 0
    %p158 = por %p156, %p157
    %p159 = scmp.ne.s32.totalorder %s147, %s148
    %p160 = scmp.eq.s32.totalorder %s19, 1
    %p161 = por %p159, %p160
    %p163 = scmp.ne.s32.totalorder %s148, %s162
    %p164 = scmp.eq.s32.totalorder %s19, 0
    %p165 = por %p163, %p164
    %s167 = sadd.s32 %s166, 1
    %p170 = scmp.eq.s32.totalorder %s13, 1
    %p171 = scmp.ne.s32.totalorder %s166, %s168
    %p172 = scmp.eq.s32.totalorder %s13, 0
    %p173 = por %p171, %p172
    %p174 = scmp.ne.s32.totalorder %s166, %s168
    %p175 = scmp.eq.s32.totalorder %s18, 1
    %p176 = por %p174, %p175
    %p177 = scmp.ne.s32.totalorder %s168, %s169
    %p178 = scmp.eq.s32.totalorder %s18, 0
    %p179 = por %p177, %p178
    %p180 = scmp.ne.s32.totalorder %s168, %s169
    %p181 = scmp.eq.s32.totalorder %s19, 1
    %p182 = por %p180, %p181
    %p184 = scmp.ne.s32.totalorder %s169, %s183
    %p185 = scmp.eq.s32.totalorder %s19, 0
    %p186 = por %p184, %p185
    %s188 = sadd.s32 %s187, 1
    %p191 = scmp.eq.s32.totalorder %s13, 1
    %p192 = scmp.ne.s32.totalorder %s187, %s189
    %p193 = scmp.eq.s32.totalorder %s13, 0
    %p194 = por %p192, %p193
    %p195 = scmp.ne.s32.totalorder %s187, %s189
    %p196 = scmp.eq.s32.totalorder %s18, 1
    %p197 = por %p195, %p196
    %p198 = scmp.ne.s32.totalorder %s189, %s190
    %p199 = scmp.eq.s32.totalorder %s18, 0
    %p200 = por %p198, %p199
    %p201 = scmp.ne.s32.totalorder %s189, %s190
    %p202 = scmp.eq.s32.totalorder %s19, 1
    %p203 = por %p201, %p202
    %p205 = scmp.ne.s32.totalorder %s190, %s204
    %p206 = scmp.eq.s32.totalorder %s19, 0
    %p207 = por %p205, %p206
    %s208 = ssub.s32 %s20, %s32
    %s209 = ssub.s32 %s21, %s28
    %s210 = sor.u32 %s208, %s209
    %p211 = scmp.eq.s32.totalorder %s210, 0
    %s213 = sadd.s32 %s212, 1
    %s214 = scalar_select %p211, %s212, %s213
    %p217 = pneg %p211
    %p218 = scmp.eq.s32.totalorder %s13, 1
    %p219 = por %p217, %p218
    %p220 = scmp.ne.s32.totalorder %s212, %s215
    %p221 = scmp.eq.s32.totalorder %s13, 0
    %p222 = por %p220, %p221
    %p223 = scmp.ne.s32.totalorder %s212, %s215
    %p224 = scmp.eq.s32.totalorder %s18, 1
    %p225 = por %p223, %p224
    %p226 = scmp.ne.s32.totalorder %s215, %s216
    %p227 = scmp.eq.s32.totalorder %s18, 0
    %p228 = por %p226, %p227
    %p229 = scmp.ne.s32.totalorder %s215, %s216
    %p230 = scmp.eq.s32.totalorder %s19, 1
    %p231 = por %p229, %p230
    %p233 = scmp.ne.s32.totalorder %s216, %s232
    %p234 = scmp.eq.s32.totalorder %s19, 0
    %p235 = por %p233, %p234
    %p236 = scmp.le.s32.totalorder 1, %s13
    %p237 = scmp.lt.s32.totalorder %s13, 3
    %p238 = pnand %p236, %p237
    %p239 = pneg %p238
    // Predicated region
    $region9: #{segformer_head.1} parent=5 // pred_check
      _
    $region10: #{segformer_head.1} parent=5 // pred_check_branch
      %241 = sbr.rel (%p238) target = $region12
    $region11: #{segformer_head.1} parent=5 // pred_region
      %s242 = ssub.s32 %s13, 1
      // Predicated region
      $region13: #{segformer_head.1} parent=11 // pred_check
        %p243 = pneg %p158
      $region14: #{segformer_head.1} parent=11 // pred_check_branch
        %245 = sbr.rel (%p243) target = $region16
      $region15: #{segformer_head.1} parent=11 // pred_region
        _
      $region16: #{segformer_head.1} parent=11 // pred_fallthru
        _
      // Predicated region
      $region17: #{segformer_head.1} parent=11 // pred_check
        %p246 = pneg %p179
      $region18: #{segformer_head.1} parent=11 // pred_check_branch
        %248 = sbr.rel (%p246) target = $region20
      $region19: #{segformer_head.1} parent=11 // pred_region
        _
      $region20: #{segformer_head.1} parent=11 // pred_fallthru
        _
      // Predicated region
      $region21: #{segformer_head.1} parent=11 // pred_check
        %p249 = pneg %p200
      $region22: #{segformer_head.1} parent=11 // pred_check_branch
        %251 = sbr.rel (%p249) target = $region24
      $region23: #{segformer_head.1} parent=11 // pred_region
        _
      $region24: #{segformer_head.1} parent=11 // pred_fallthru
        _
    $region12: #{segformer_head.1} parent=5 // pred_fallthru
      _
    %p252 = scmp.lt.s32.totalorder %s13, 2
    // Predicated region
    $region25: #{segformer_head.1} parent=5 // pred_check
      %p253 = pneg %p252
    $region26: #{segformer_head.1} parent=5 // pred_check_branch
      %255 = sbr.rel (%p253) target = $region28
    $region27: #{segformer_head.1} parent=5 // pred_region
      // Predicated region
      $region29: #{segformer_head.1} parent=27 // pred_check
        %p256 = pneg %p47
      $region30: #{segformer_head.1} parent=27 // pred_check_branch
        %258 = sbr.rel (%p256) target = $region32
      $region31: #{segformer_head.1} parent=27 // pred_region
        %s259 = smul.u32 2, %s21
        %p260 = scmp.lt.s32.totalorder %s20, 1
        %s261 = scalar_select %p260, %s20, 1
        %p262 = scmp.lt.s32.totalorder %s259, 1
        %s263 = scalar_select %p262, %s259, 1
        %s264 = smul.addr %s261, 2
        %s265 = sadd.s32 %s263, %s264
        %s266 = smul.addr %s265, 4
        %s267 = scalar_lea.vmem %s0, %s266
        %s268 = smul.u32 2, %s21
      $region32: #{segformer_head.1} parent=27 // pred_fallthru
        _
      // Predicated region
      $region33: #{segformer_head.1} parent=27 // pred_check
        %p269 = pneg %p75
      $region34: #{segformer_head.1} parent=27 // pred_check_branch
        %271 = sbr.rel (%p269) target = $region36
      $region35: #{segformer_head.1} parent=27 // pred_region
        %s272 = smul.u32 2, %s21
        %p273 = scmp.lt.s32.totalorder %s20, 1
        %s274 = scalar_select %p273, %s20, 1
        %p275 = scmp.lt.s32.totalorder %s272, 1
        %s276 = scalar_select %p275, %s272, 1
        %s277 = smul.addr %s274, 2
        %s278 = sadd.s32 %s276, %s277
        %s279 = smul.addr %s278, 4
        %s280 = scalar_lea.vmem %s1, %s279
        %s281 = smul.u32 2, %s21
      $region36: #{segformer_head.1} parent=27 // pred_fallthru
        _
      // Predicated region
      $region37: #{segformer_head.1} parent=27 // pred_check
        %p282 = pneg %p103
      $region38: #{segformer_head.1} parent=27 // pred_check_branch
        %284 = sbr.rel (%p282) target = $region40
      $region39: #{segformer_head.1} parent=27 // pred_region
        %s285 = smul.u32 2, %s21
        %p286 = scmp.lt.s32.totalorder %s20, 1
        %s287 = scalar_select %p286, %s20, 1
        %p288 = scmp.lt.s32.totalorder %s285, 1
        %s289 = scalar_select %p288, %s285, 1
        %s290 = smul.addr %s287, 2
        %s291 = sadd.s32 %s289, %s290
        %s292 = smul.addr %s291, 4
        %s293 = scalar_lea.vmem %s2, %s292
        %s294 = smul.u32 2, %s21
      $region40: #{segformer_head.1} parent=27 // pred_fallthru
        _
      // Predicated region
      $region41: #{segformer_head.1} parent=27 // pred_check
        %p295 = pneg %p131
      $region42: #{segformer_head.1} parent=27 // pred_check_branch
        %297 = sbr.rel (%p295) target = $region44
      $region43: #{segformer_head.1} parent=27 // pred_region
        %s298 = smul.u32 2, %s21
        %p299 = scmp.lt.s32.totalorder %s20, 1
        %s300 = scalar_select %p299, %s20, 1
        %p301 = scmp.lt.s32.totalorder %s298, 1
        %s302 = scalar_select %p301, %s298, 1
        %s303 = smul.addr %s300, 2
        %s304 = sadd.s32 %s302, %s303
        %s305 = smul.addr %s304, 4
        %s306 = scalar_lea.vmem %s3, %s305
        %s307 = smul.u32 2, %s21
      $region44: #{segformer_head.1} parent=27 // pred_fallthru
        _
    $region28: #{segformer_head.1} parent=5 // pred_fallthru
      _
    %p308 = scmp.le.s32.totalorder 1, %s13
    %p309 = scmp.lt.s32.totalorder %s13, 3
    %p310 = pnand %p308, %p309
    %p311 = pneg %p310
    // Predicated region
    $region45: #{segformer_head.1} parent=5 // pred_check
      _
    $region46: #{segformer_head.1} parent=5 // pred_check_branch
      %313 = sbr.rel (%p310) target = $region48
    $region47: #{segformer_head.1} parent=5 // pred_region
      %s314 = ssub.s32 %s13, 1
      %s315 = smul.u32 2, %s23
      %p316 = scmp.lt.s32.totalorder %s22, 1
      %s317 = scalar_select %p316, %s22, 1
      %p318 = scmp.lt.s32.totalorder %s315, 1
      %s319 = scalar_select %p318, %s315, 1
      %s320 = smul.addr %s317, 2
      %s321 = sadd.s32 %s319, %s320
      %s322 = smul.addr %s321, 4
      %s323 = scalar_lea.vmem %s0, %s322
      %p324 = pneg %p53
      %p325 = pneg %p50
      %s326 = smul.u32 2, %s23
      %p327 = scmp.lt.s32.totalorder %s22, 1
      %s328 = scalar_select %p327, %s22, 1
      %p329 = scmp.lt.s32.totalorder %s326, 1
      %s330 = scalar_select %p329, %s326, 1
      %s331 = smul.addr %s328, 2
      %s332 = sadd.s32 %s330, %s331
      %s333 = smul.addr %s332, 4
      %s334 = scalar_lea.vmem %s1, %s333
      %p335 = pneg %p81
      %p336 = pneg %p78
      %s337 = smul.u32 2, %s23
      %p338 = scmp.lt.s32.totalorder %s22, 1
      %s339 = scalar_select %p338, %s22, 1
      %p340 = scmp.lt.s32.totalorder %s337, 1
      %s341 = scalar_select %p340, %s337, 1
      %s342 = smul.addr %s339, 2
      %s343 = sadd.s32 %s341, %s342
      %s344 = smul.addr %s343, 4
      %s345 = scalar_lea.vmem %s2, %s344
      %p346 = pneg %p109
      %p347 = pneg %p106
      %s348 = smul.u32 2, %s23
      %p349 = scmp.lt.s32.totalorder %s22, 1
      %s350 = scalar_select %p349, %s22, 1
      %p351 = scmp.lt.s32.totalorder %s348, 1
      %s352 = scalar_select %p351, %s348, 1
      %s353 = smul.addr %s350, 2
      %s354 = sadd.s32 %s352, %s353
      %s355 = smul.addr %s354, 4
      %s356 = scalar_lea.vmem %s3, %s355
      %p357 = pneg %p137
      %p358 = pneg %p134
      %p359 = pneg %p158
      %p360 = pneg %p155
      %p361 = pneg %p179
      %p362 = pneg %p176
      %p363 = pneg %p200
      %p364 = pneg %p197
      %p365 = pneg %p228
      %p366 = pneg %p225
      %s367 = smul.u32 2, %s23
      %p368 = scmp.lt.s32.totalorder %s22, 1
      %s369 = scalar_select %p368, %s22, 1
      %p370 = scmp.lt.s32.totalorder %s367, 1
      %s371 = scalar_select %p370, %s367, 1
      %s372 = smul.addr %s369, 2
      %s373 = sadd.s32 %s371, %s372
      %s374 = smul.addr %s373, 4
      %s375 = scalar_lea.vmem %s7, %s374
      %s376 = smul.u32 2, %s23
      %p377 = scmp.lt.s32.totalorder %s22, 1
      %s378 = scalar_select %p377, %s22, 1
      %p379 = scmp.lt.s32.totalorder %s376, 1
      %s380 = scalar_select %p379, %s376, 1
      %s381 = smul.addr %s378, 2
      %s382 = sadd.s32 %s380, %s381
      %s383 = smul.addr %s382, 4
      %s384 = scalar_lea.vmem %s0, %s383
      %s385 = smul.u32 2, %s23
      %s386 = smul.u32 2, %s23
      %p387 = scmp.lt.s32.totalorder %s22, 1
      %s388 = scalar_select %p387, %s22, 1
      %p389 = scmp.lt.s32.totalorder %s386, 1
      %s390 = scalar_select %p389, %s386, 1
      %s391 = smul.addr %s388, 2
      %s392 = sadd.s32 %s390, %s391
      %s393 = smul.addr %s392, 4
      %s394 = scalar_lea.vmem %s1, %s393
      %s395 = smul.u32 2, %s23
      %s396 = smul.u32 2, %s23
      %p397 = scmp.lt.s32.totalorder %s22, 1
      %s398 = scalar_select %p397, %s22, 1
      %p399 = scmp.lt.s32.totalorder %s396, 1
      %s400 = scalar_select %p399, %s396, 1
      %s401 = smul.addr %s398, 2
      %s402 = sadd.s32 %s400, %s401
      %s403 = smul.addr %s402, 4
      %s404 = scalar_lea.vmem %s2, %s403
      %s405 = smul.u32 2, %s23
      %s406 = smul.u32 2, %s23
      %p407 = scmp.lt.s32.totalorder %s22, 1
      %s408 = scalar_select %p407, %s22, 1
      %p409 = scmp.lt.s32.totalorder %s406, 1
      %s410 = scalar_select %p409, %s406, 1
      %s411 = smul.addr %s408, 2
      %s412 = sadd.s32 %s410, %s411
      %s413 = smul.addr %s412, 4
      %s414 = scalar_lea.vmem %s3, %s413
      %s415 = smul.u32 2, %s23
      %s416 = smul.u32 2, %s23
      %p417 = scmp.lt.s32.totalorder %s22, 1
      %s418 = scalar_select %p417, %s22, 1
      %p419 = scmp.lt.s32.totalorder %s416, 1
      %s420 = scalar_select %p419, %s416, 1
      %s421 = smul.addr %s418, 2
      %s422 = sadd.s32 %s420, %s421
      %s423 = smul.addr %s422, 4
      %s424 = scalar_lea.vmem %s7, %s423
      %s425 = smul.u32 2, %s23
      %v426 = vld [vmem:[%s4] sm:$0xf]
      %v427 = vld [vmem:[%s384] sm:$0xff]
      %s428 = scalar_lea.vmem %s4, 4
      %v429 = vld [vmem:[%s428] sm:$0xf]
      %v430 = vld [vmem:[%s394] sm:$0xff]
      %v432 = vcombine.high %v430, %v430
      %vm433 = vcmask 31744
      %v435 = vsel %vm433, %v429, 0
      %vm437 = vcmask 1043456
      %v438 = vsel %vm437, %v430, 0
      %v440 = vsel %vm437, %v432, 0
      %442 = vmatprep.subr.mxu0 %v440
      %443 = vmatpush1.msra.mxu0 %v438
      %444 = vmatprep.subr.mxu0 0.0
      %445 = vmatpush1.msra.mxu0 0.0
      %446 = vmatprep.subr.mxu0 0.0
      %447 = vmatpush1.msra.mxu0 0.0
      %448 = vmatprep.subr.mxu0 0.0
      %449 = vmatpush1.msra.mxu0 0.0
      %450 = vmatprep.subr.mxu0 0.0
      %451 = vmatpush1.msra.mxu0 0.0
      %452 = vmatprep.subr.mxu0 0.0
      %453 = vmatpush1.msra.mxu0 0.0
      %454 = vmatprep.subr.mxu0 0.0
      %455 = vmatpush1.msra.mxu0 0.0
      %456 = vmatprep.subr.mxu0 0.0
      %457 = vmatpush1.msra.mxu0 0.0
      %458 = vmatprep.subr.mxu0 0.0
      %459 = vmatpush1.msra.mxu0 0.0
      %460 = vmatprep.subr.mxu0 0.0
      %461 = vmatpush1.msra.mxu0 0.0
      %462 = vmatprep.subr.mxu0 0.0
      %463 = vmatpush1.msra.mxu0 0.0
      %464 = vmatprep.subr.mxu0 0.0
      %465 = vmatpush1.msra.mxu0 0.0
      %466 = vmatprep.subr.mxu0 0.0
      %467 = vmatpush1.msra.mxu0 0.0
      %468 = vmatprep.subr.mxu0 0.0
      %469 = vmatpush1.msra.mxu0 0.0
      %470 = vmatprep.subr.mxu0 0.0
      %471 = vmatpush1.msra.mxu0 0.0
      %472 = vmatprep.subr.mxu0 0.0
      %473 = vmatpush1.msra.mxu0 0.0
      %474 = vmatprep.subr.mxu0 0.0
      %475 = vmatpush1.msra.mxu0 0.0
      %476 = vmatprep.subr.mxu0 0.0
      %477 = vmatpush1.msra.mxu0 0.0
      %478 = vmatprep.subr.mxu0 0.0
      %479 = vmatpush1.msra.mxu0 0.0
      %480 = vmatprep.subr.mxu0 0.0
      %481 = vmatpush1.msra.mxu0 0.0
      %482 = vmatprep.subr.mxu0 0.0
      %483 = vmatpush1.msra.mxu0 0.0
      %484 = vmatprep.subr.mxu0 0.0
      %485 = vmatpush1.msra.mxu0 0.0
      %486 = vmatprep.subr.mxu0 0.0
      %487 = vmatpush1.msra.mxu0 0.0
      %488 = vmatprep.subr.mxu0 0.0
      %489 = vmatpush1.msra.mxu0 0.0
      %490 = vmatprep.subr.mxu0 0.0
      %491 = vmatpush1.msra.mxu0 0.0
      %492 = vmatprep.subr.mxu0 0.0
      %493 = vmatpush1.msra.mxu0 0.0
      %494 = vmatprep.subr.mxu0 0.0
      %495 = vmatpush1.msra.mxu0 0.0
      %496 = vmatprep.subr.mxu0 0.0
      %497 = vmatpush1.msra.mxu0 0.0
      %498 = vmatprep.subr.mxu0 0.0
      %499 = vmatpush1.msra.mxu0 0.0
      %500 = vmatprep.subr.mxu0 0.0
      %501 = vmatpush1.msra.mxu0 0.0
      %502 = vmatprep.subr.mxu0 0.0
      %503 = vmatpush1.msra.mxu0 0.0
      %504 = vmatprep.subr.mxu0 0.0
      %505 = vmatpush1.msra.mxu0 0.0
      %506 = vmatprep.mubr.f32.mxu0 0.0
      %507 = vmatmul.mubr.f32.gmra.mrb[0].mxu0 %v435
      %v508 = vpop.f32.mrb[0].mxu0
      %v509 = vadd.f32 0.0, %v508
      %v510 = vpop.f32.mrb[0].mxu0
      %v511 = vadd.f32 0.0, %v510
      %512 = vdwg.mxu0
      %v514 = vcombine.high %v427, %v427
      %v516 = vsel %vm433, %v426, 0
      %v518 = vsel %vm437, %v427, 0
      %v520 = vsel %vm437, %v514, 0
      %522 = vmatprep.subr.mxu0 %v520
      %523 = vmatpush1.msra.mxu0 %v518
      %524 = vmatprep.subr.mxu0 0.0
      %525 = vmatpush1.msra.mxu0 0.0
      %526 = vmatprep.subr.mxu0 0.0
      %527 = vmatpush1.msra.mxu0 0.0
      %528 = vmatprep.subr.mxu0 0.0
      %529 = vmatpush1.msra.mxu0 0.0
      %530 = vmatprep.subr.mxu0 0.0
      %531 = vmatpush1.msra.mxu0 0.0
      %532 = vmatprep.subr.mxu0 0.0
      %533 = vmatpush1.msra.mxu0 0.0
      %534 = vmatprep.subr.mxu0 0.0
      %535 = vmatpush1.msra.mxu0 0.0
      %536 = vmatprep.subr.mxu0 0.0
      %537 = vmatpush1.msra.mxu0 0.0
      %538 = vmatprep.subr.mxu0 0.0
      %539 = vmatpush1.msra.mxu0 0.0
      %540 = vmatprep.subr.mxu0 0.0
      %541 = vmatpush1.msra.mxu0 0.0
      %542 = vmatprep.subr.mxu0 0.0
      %543 = vmatpush1.msra.mxu0 0.0
      %544 = vmatprep.subr.mxu0 0.0
      %545 = vmatpush1.msra.mxu0 0.0
      %546 = vmatprep.subr.mxu0 0.0
      %547 = vmatpush1.msra.mxu0 0.0
      %548 = vmatprep.subr.mxu0 0.0
      %549 = vmatpush1.msra.mxu0 0.0
      %550 = vmatprep.subr.mxu0 0.0
      %551 = vmatpush1.msra.mxu0 0.0
      %552 = vmatprep.subr.mxu0 0.0
      %553 = vmatpush1.msra.mxu0 0.0
      %554 = vmatprep.subr.mxu0 0.0
      %555 = vmatpush1.msra.mxu0 0.0
      %556 = vmatprep.subr.mxu0 0.0
      %557 = vmatpush1.msra.mxu0 0.0
      %558 = vmatprep.subr.mxu0 0.0
      %559 = vmatpush1.msra.mxu0 0.0
      %560 = vmatprep.subr.mxu0 0.0
      %561 = vmatpush1.msra.mxu0 0.0
      %562 = vmatprep.subr.mxu0 0.0
      %563 = vmatpush1.msra.mxu0 0.0
      %564 = vmatprep.subr.mxu0 0.0
      %565 = vmatpush1.msra.mxu0 0.0
      %566 = vmatprep.subr.mxu0 0.0
      %567 = vmatpush1.msra.mxu0 0.0
      %568 = vmatprep.subr.mxu0 0.0
      %569 = vmatpush1.msra.mxu0 0.0
      %570 = vmatprep.subr.mxu0 0.0
      %571 = vmatpush1.msra.mxu0 0.0
      %572 = vmatprep.subr.mxu0 0.0
      %573 = vmatpush1.msra.mxu0 0.0
      %574 = vmatprep.subr.mxu0 0.0
      %575 = vmatpush1.msra.mxu0 0.0
      %576 = vmatprep.subr.mxu0 0.0
      %577 = vmatpush1.msra.mxu0 0.0
      %578 = vmatprep.subr.mxu0 0.0
      %579 = vmatpush1.msra.mxu0 0.0
      %580 = vmatprep.subr.mxu0 0.0
      %581 = vmatpush1.msra.mxu0 0.0
      %582 = vmatprep.subr.mxu0 0.0
      %583 = vmatpush1.msra.mxu0 0.0
      %584 = vmatprep.subr.mxu0 0.0
      %585 = vmatpush1.msra.mxu0 0.0
      %586 = vmatprep.mubr.f32.mxu0 0.0
      %587 = vmatmul.mubr.f32.gmra.mrb[0].mxu0 %v516
      %v588 = vpop.f32.mrb[0].mxu0
      %v589 = vadd.f32 %v509, %v588
      %v590 = vpop.f32.mrb[0].mxu0
      %v591 = vadd.f32 %v511, %v590
      %592 = vdwg.mxu0
      %s593 = scalar_lea.vmem %s4, 8
      %v594 = vld [vmem:[%s593] sm:$0xf]
      %v595 = vld [vmem:[%s404] sm:$0xff]
      %v597 = vcombine.high %v595, %v595
      %v599 = vsel %vm433, %v594, 0
      %v601 = vsel %vm437, %v595, 0
      %v603 = vsel %vm437, %v597, 0
      %605 = vmatprep.subr.mxu0 %v603
      %606 = vmatpush1.msra.mxu0 %v601
      %607 = vmatprep.subr.mxu0 0.0
      %608 = vmatpush1.msra.mxu0 0.0
      %609 = vmatprep.subr.mxu0 0.0
      %610 = vmatpush1.msra.mxu0 0.0
      %611 = vmatprep.subr.mxu0 0.0
      %612 = vmatpush1.msra.mxu0 0.0
      %613 = vmatprep.subr.mxu0 0.0
      %614 = vmatpush1.msra.mxu0 0.0
      %615 = vmatprep.subr.mxu0 0.0
      %616 = vmatpush1.msra.mxu0 0.0
      %617 = vmatprep.subr.mxu0 0.0
      %618 = vmatpush1.msra.mxu0 0.0
      %619 = vmatprep.subr.mxu0 0.0
      %620 = vmatpush1.msra.mxu0 0.0
      %621 = vmatprep.subr.mxu0 0.0
      %622 = vmatpush1.msra.mxu0 0.0
      %623 = vmatprep.subr.mxu0 0.0
      %624 = vmatpush1.msra.mxu0 0.0
      %625 = vmatprep.subr.mxu0 0.0
      %626 = vmatpush1.msra.mxu0 0.0
      %627 = vmatprep.subr.mxu0 0.0
      %628 = vmatpush1.msra.mxu0 0.0
      %629 = vmatprep.subr.mxu0 0.0
      %630 = vmatpush1.msra.mxu0 0.0
      %631 = vmatprep.subr.mxu0 0.0
      %632 = vmatpush1.msra.mxu0 0.0
      %633 = vmatprep.subr.mxu0 0.0
      %634 = vmatpush1.msra.mxu0 0.0
      %635 = vmatprep.subr.mxu0 0.0
      %636 = vmatpush1.msra.mxu0 0.0
      %637 = vmatprep.subr.mxu0 0.0
      %638 = vmatpush1.msra.mxu0 0.0
      %639 = vmatprep.subr.mxu0 0.0
      %640 = vmatpush1.msra.mxu0 0.0
      %641 = vmatprep.subr.mxu0 0.0
      %642 = vmatpush1.msra.mxu0 0.0
      %643 = vmatprep.subr.mxu0 0.0
      %644 = vmatpush1.msra.mxu0 0.0
      %645 = vmatprep.subr.mxu0 0.0
      %646 = vmatpush1.msra.mxu0 0.0
      %647 = vmatprep.subr.mxu0 0.0
      %648 = vmatpush1.msra.mxu0 0.0
      %649 = vmatprep.subr.mxu0 0.0
      %650 = vmatpush1.msra.mxu0 0.0
      %651 = vmatprep.subr.mxu0 0.0
      %652 = vmatpush1.msra.mxu0 0.0
      %653 = vmatprep.subr.mxu0 0.0
      %654 = vmatpush1.msra.mxu0 0.0
      %655 = vmatprep.subr.mxu0 0.0
      %656 = vmatpush1.msra.mxu0 0.0
      %657 = vmatprep.subr.mxu0 0.0
      %658 = vmatpush1.msra.mxu0 0.0
      %659 = vmatprep.subr.mxu0 0.0
      %660 = vmatpush1.msra.mxu0 0.0
      %661 = vmatprep.subr.mxu0 0.0
      %662 = vmatpush1.msra.mxu0 0.0
      %663 = vmatprep.subr.mxu0 0.0
      %664 = vmatpush1.msra.mxu0 0.0
      %665 = vmatprep.subr.mxu0 0.0
      %666 = vmatpush1.msra.mxu0 0.0
      %667 = vmatprep.subr.mxu0 0.0
      %668 = vmatpush1.msra.mxu0 0.0
      %669 = vmatprep.mubr.f32.mxu0 0.0
      %670 = vmatmul.mubr.f32.gmra.mrb[0].mxu0 %v599
      %v671 = vpop.f32.mrb[0].mxu0
      %v672 = vadd.f32 0.0, %v671
      %v673 = vpop.f32.mrb[0].mxu0
      %v674 = vadd.f32 0.0, %v673
      %675 = vdwg.mxu0
      %v676 = vadd.f32 %v589, %v672
      %v677 = vadd.f32 %v591, %v674
      %s678 = scalar_lea.vmem %s4, 12
      %v679 = vld [vmem:[%s678] sm:$0xf]
      %v680 = vld [vmem:[%s414] sm:$0xff]
      %v682 = vcombine.high %v680, %v680
      %v684 = vsel %vm433, %v679, 0
      %v686 = vsel %vm437, %v680, 0
      %v688 = vsel %vm437, %v682, 0
      %690 = vmatprep.subr.mxu0 %v688
      %691 = vmatpush1.msra.mxu0 %v686
      %692 = vmatprep.subr.mxu0 0.0
      %693 = vmatpush1.msra.mxu0 0.0
      %694 = vmatprep.subr.mxu0 0.0
      %695 = vmatpush1.msra.mxu0 0.0
      %696 = vmatprep.subr.mxu0 0.0
      %697 = vmatpush1.msra.mxu0 0.0
      %698 = vmatprep.subr.mxu0 0.0
      %699 = vmatpush1.msra.mxu0 0.0
      %700 = vmatprep.subr.mxu0 0.0
      %701 = vmatpush1.msra.mxu0 0.0
      %702 = vmatprep.subr.mxu0 0.0
      %703 = vmatpush1.msra.mxu0 0.0
      %704 = vmatprep.subr.mxu0 0.0
      %705 = vmatpush1.msra.mxu0 0.0
      %706 = vmatprep.subr.mxu0 0.0
      %707 = vmatpush1.msra.mxu0 0.0
      %708 = vmatprep.subr.mxu0 0.0
      %709 = vmatpush1.msra.mxu0 0.0
      %710 = vmatprep.subr.mxu0 0.0
      %711 = vmatpush1.msra.mxu0 0.0
      %712 = vmatprep.subr.mxu0 0.0
      %713 = vmatpush1.msra.mxu0 0.0
      %714 = vmatprep.subr.mxu0 0.0
      %715 = vmatpush1.msra.mxu0 0.0
      %716 = vmatprep.subr.mxu0 0.0
      %717 = vmatpush1.msra.mxu0 0.0
      %718 = vmatprep.subr.mxu0 0.0
      %719 = vmatpush1.msra.mxu0 0.0
      %720 = vmatprep.subr.mxu0 0.0
      %721 = vmatpush1.msra.mxu0 0.0
      %722 = vmatprep.subr.mxu0 0.0
      %723 = vmatpush1.msra.mxu0 0.0
      %724 = vmatprep.subr.mxu0 0.0
      %725 = vmatpush1.msra.mxu0 0.0
      %726 = vmatprep.subr.mxu0 0.0
      %727 = vmatpush1.msra.mxu0 0.0
      %728 = vmatprep.subr.mxu0 0.0
      %729 = vmatpush1.msra.mxu0 0.0
      %730 = vmatprep.subr.mxu0 0.0
      %731 = vmatpush1.msra.mxu0 0.0
      %732 = vmatprep.subr.mxu0 0.0
      %733 = vmatpush1.msra.mxu0 0.0
      %734 = vmatprep.subr.mxu0 0.0
      %735 = vmatpush1.msra.mxu0 0.0
      %736 = vmatprep.subr.mxu0 0.0
      %737 = vmatpush1.msra.mxu0 0.0
      %738 = vmatprep.subr.mxu0 0.0
      %739 = vmatpush1.msra.mxu0 0.0
      %740 = vmatprep.subr.mxu0 0.0
      %741 = vmatpush1.msra.mxu0 0.0
      %742 = vmatprep.subr.mxu0 0.0
      %743 = vmatpush1.msra.mxu0 0.0
      %744 = vmatprep.subr.mxu0 0.0
      %745 = vmatpush1.msra.mxu0 0.0
      %746 = vmatprep.subr.mxu0 0.0
      %747 = vmatpush1.msra.mxu0 0.0
      %748 = vmatprep.subr.mxu0 0.0
      %749 = vmatpush1.msra.mxu0 0.0
      %750 = vmatprep.subr.mxu0 0.0
      %751 = vmatpush1.msra.mxu0 0.0
      %752 = vmatprep.subr.mxu0 0.0
      %753 = vmatpush1.msra.mxu0 0.0
      %754 = vmatprep.mubr.f32.mxu0 0.0
      %755 = vmatmul.mubr.f32.gmra.mrb[0].mxu0 %v684
      %v756 = vpop.f32.mrb[0].mxu0
      %v757 = vadd.f32 0.0, %v756
      %v758 = vpop.f32.mrb[0].mxu0
      %v759 = vadd.f32 0.0, %v758
      %760 = vdwg.mxu0
      %v761 = vadd.f32 %v676, %v757
      %v762 = vadd.f32 %v677, %v759
      %v763 = vmax.f32 %v761, 0.0
      %v764 = vmax.f32 %v762, 0.0
      %v765 = vld [vmem:[%s5] sm:$0x7]
      %v766 = vld [vmem:[%s6] sm:$0x7]
      %768 = vset.pattern.permute.xlu0 0
      %769 = vperm.xlu0 %768, %v766
      %v770 = vpop.permute.xlu0 %769
      %v773 = vsel %vm433, %v765, 0
      %v776 = vsel %vm437, %v763, 0
      %v779 = vsel %vm437, %v764, 0
      %781 = vmatprep.subr.mxu0 %v779
      %782 = vmatpush1.msra.mxu0 %v776
      %783 = vmatprep.subr.mxu0 0.0
      %784 = vmatpush1.msra.mxu0 0.0
      %785 = vmatprep.subr.mxu0 0.0
      %786 = vmatpush1.msra.mxu0 0.0
      %787 = vmatprep.subr.mxu0 0.0
      %788 = vmatpush1.msra.mxu0 0.0
      %789 = vmatprep.subr.mxu0 0.0
      %790 = vmatpush1.msra.mxu0 0.0
      %791 = vmatprep.subr.mxu0 0.0
      %792 = vmatpush1.msra.mxu0 0.0
      %793 = vmatprep.subr.mxu0 0.0
      %794 = vmatpush1.msra.mxu0 0.0
      %795 = vmatprep.subr.mxu0 0.0
      %796 = vmatpush1.msra.mxu0 0.0
      %797 = vmatprep.subr.mxu0 0.0
      %798 = vmatpush1.msra.mxu0 0.0
      %799 = vmatprep.subr.mxu0 0.0
      %800 = vmatpush1.msra.mxu0 0.0
      %801 = vmatprep.subr.mxu0 0.0
      %802 = vmatpush1.msra.mxu0 0.0
      %803 = vmatprep.subr.mxu0 0.0
      %804 = vmatpush1.msra.mxu0 0.0
      %805 = vmatprep.subr.mxu0 0.0
      %806 = vmatpush1.msra.mxu0 0.0
      %807 = vmatprep.subr.mxu0 0.0
      %808 = vmatpush1.msra.mxu0 0.0
      %809 = vmatprep.subr.mxu0 0.0
      %810 = vmatpush1.msra.mxu0 0.0
      %811 = vmatprep.subr.mxu0 0.0
      %812 = vmatpush1.msra.mxu0 0.0
      %813 = vmatprep.subr.mxu0 0.0
      %814 = vmatpush1.msra.mxu0 0.0
      %815 = vmatprep.subr.mxu0 0.0
      %816 = vmatpush1.msra.mxu0 0.0
      %817 = vmatprep.subr.mxu0 0.0
      %818 = vmatpush1.msra.mxu0 0.0
      %819 = vmatprep.subr.mxu0 0.0
      %820 = vmatpush1.msra.mxu0 0.0
      %821 = vmatprep.subr.mxu0 0.0
      %822 = vmatpush1.msra.mxu0 0.0
      %823 = vmatprep.subr.mxu0 0.0
      %824 = vmatpush1.msra.mxu0 0.0
      %825 = vmatprep.subr.mxu0 0.0
      %826 = vmatpush1.msra.mxu0 0.0
      %827 = vmatprep.subr.mxu0 0.0
      %828 = vmatpush1.msra.mxu0 0.0
      %829 = vmatprep.subr.mxu0 0.0
      %830 = vmatpush1.msra.mxu0 0.0
      %831 = vmatprep.subr.mxu0 0.0
      %832 = vmatpush1.msra.mxu0 0.0
      %833 = vmatprep.subr.mxu0 0.0
      %834 = vmatpush1.msra.mxu0 0.0
      %835 = vmatprep.subr.mxu0 0.0
      %836 = vmatpush1.msra.mxu0 0.0
      %837 = vmatprep.subr.mxu0 0.0
      %838 = vmatpush1.msra.mxu0 0.0
      %839 = vmatprep.subr.mxu0 0.0
      %840 = vmatpush1.msra.mxu0 0.0
      %841 = vmatprep.subr.mxu0 0.0
      %842 = vmatpush1.msra.mxu0 0.0
      %843 = vmatprep.subr.mxu0 0.0
      %844 = vmatpush1.msra.mxu0 0.0
      %845 = vmatprep.mubr.f32.mxu0 0.0
      %846 = vmatmul.mubr.f32.gmra.mrb[0].mxu0 %v773
      %v847 = vpop.f32.mrb[0].mxu0
      %v848 = vadd.f32 %v770, %v847
      %v849 = vpop.f32.mrb[0].mxu0
      %v850 = vadd.f32 %v770, %v849
      %851 = vdwg.mxu0
      %v854 = vcombine.low %v848, %v850
      %856 = vst [vmem:[%s424] sm:$0x77] %v854
      %s857 = smul.u32 2, %s23
      %p858 = scmp.lt.s32.totalorder %s22, 1
      %s859 = scalar_select %p858, %s22, 1
      %p860 = scmp.lt.s32.totalorder %s857, 1
      %s861 = scalar_select %p860, %s857, 1
      %s862 = smul.addr %s859, 2
      %s863 = sadd.s32 %s861, %s862
      %s864 = smul.addr %s863, 4
      %s865 = scalar_lea.vmem %s7, %s864
      // Predicated region
      $region49: #{segformer_head.1} parent=47 // pred_check
        %p866 = pneg %p225
      $region50: #{segformer_head.1} parent=47 // pred_check_branch
        %868 = sbr.rel (%p866) target = $region52
      $region51: #{segformer_head.1} parent=47 // pred_region
        %s869 = smul.u32 2, %s23
      $region52: #{segformer_head.1} parent=47 // pred_fallthru
        _
    $region48: #{segformer_head.1} parent=5 // pred_fallthru
      _
    %p870 = scmp.le.s32.totalorder 2, %s13
    // Predicated region
    $region53: #{segformer_head.1} parent=5 // pred_check
      %p871 = pneg %p870
    $region54: #{segformer_head.1} parent=5 // pred_check_branch
      %873 = sbr.rel (%p871) target = $region56
    $region55: #{segformer_head.1} parent=5 // pred_region
      %s874 = ssub.s32 %s13, 2
      // Predicated region
      $region57: #{segformer_head.1} parent=55 // pred_check
        %p875 = pneg %p231
      $region58: #{segformer_head.1} parent=55 // pred_check_branch
        %877 = sbr.rel (%p875) target = $region60
      $region59: #{segformer_head.1} parent=55 // pred_region
        %s878 = smul.u32 2, %s25
        %p879 = scmp.lt.s32.totalorder %s24, 1
        %s880 = scalar_select %p879, %s24, 1
        %p881 = scmp.lt.s32.totalorder %s878, 1
        %s882 = scalar_select %p881, %s878, 1
        %s883 = smul.addr %s880, 2
        %s884 = sadd.s32 %s882, %s883
        %s885 = smul.addr %s884, 4
        %s886 = scalar_lea.vmem %s7, %s885
      $region60: #{segformer_head.1} parent=55 // pred_fallthru
        _
    $region56: #{segformer_head.1} parent=5 // pred_fallthru
      _
  $region6: #{segformer_head.1} parent=0 // loop_footer
    %s17 = sadd.s32 1, %s13
  $region7: #{segformer_head.1} parent=0 // loop_footer_branch
    %12 = sbr.rel target = $region3
  $region8: #{segformer_head.1} parent=0 // loop_exit
    _

</llo_original>
